<compile_context>
chip_gen: v5e
topology: v5e:2x2
jax: 0.10.0
libtpu: 0.0.40
codegen_flags: <defaults>
</compile_context>

<pallas_src>
import functools

import jax
import jax.numpy as jnp
from jax import lax
from jax.experimental import pallas as pl
from jax.experimental.pallas import tpu as pltpu


def _round_up(v, m):
    return ((v + m - 1) // m) * m


def _mlp_kernel(x_ref, w1_ref, b1_ref, w2_ref, b2_ref, o_ref, *, sub, num_sub):
    # x_ref : (2, TB)  -- batch on the lane axis
    # w1_ref: (H, 2)   b1_ref: (H, 1)   w2_ref: (H, 1)   b2_ref: (1, 1) in SMEM
    # o_ref : (1, TB)  -- lane-dense output row
    w1c0 = w1_ref[:, 0:1]                                # (H, 1)
    w1c1 = w1_ref[:, 1:2]                                # (H, 1)
    b1 = b1_ref[...]                                     # (H, 1)
    w2 = w2_ref[...]                                     # (H, 1)
    b2 = b2_ref[0, 0]                                    # scalar from SMEM

    def body(c, carry):
        off = pl.multiple_of(c * sub, 128)               # aligned lane offset
        x0 = x_ref[0:1, pl.ds(off, sub)]                 # (1, sub)
        x1 = x_ref[1:2, pl.ds(off, sub)]                 # (1, sub)

        # fc1 as two VPU broadcast-FMAs (skip the MXU for a K=2 contraction).
        h = jnp.maximum(w1c0 * x0 + w1c1 * x1 + b1, 0.0)  # (H, sub), relu on VPU

        # fc2 as elementwise mul + cross-sublane reduction (XLU slot).
        z = jnp.sum(h * w2, axis=0, keepdims=True) + b2   # (1, sub)

        # sigmoid: exp on the EUP; exact divide keeps parity with reference.
        o_ref[0:1, pl.ds(off, sub)] = 1.0 / (1.0 + jnp.exp(-z))
        return carry

    # Fully unrolled sub-chunk loop: amortizes grid-step overhead without
    # materializing an (H, TB) intermediate (which would spill at large TB).
    lax.fori_loop(0, num_sub, body, 0, unroll=True)


def logic_gate_net(x, w1, b1, w2, b2, *, block_batch=8192, sub_chunk=512):
    """Pallas forward for LogicGateNet.

    x:  (N, 2) float32
    w1: (2, H) float32   b1: (1, H) float32
    w2: (H, 1) float32   b2: (1, 1) float32
    returns: (N, 1) float32
    """
    n = x.shape[0]
    hidden = w1.shape[1]

    # ---- Tile selection ----------------------------------------------------
    # Lane-dense batch tile (multiple of 128), large enough to amortize the
    # ~0.35 us per-grid-step overhead, small enough to never matter for VMEM
    # (per-step footprint ~24*TB bytes).
    n_lanes = _round_up(n, 128)
    if n_lanes <= sub_chunk:
        tb = n_lanes
        sub = tb
    else:
        tb = min(_round_up(block_batch, sub_chunk), _round_up(n_lanes, sub_chunk))
        # v7x: if a single tile would cover the whole batch, split into >= 2
        # grid steps so the "parallel" axis engages both TensorCores.
        if tb >= n_lanes and n_lanes >= 2 * sub_chunk:
            tb = _round_up((n_lanes + 1) // 2, sub_chunk)
        sub = sub_chunk
    num_sub = tb // sub
    n_pad = _round_up(n, tb)

    # ---- Layout plumbing only (no compute hoisting) ------------------------
    # Batch onto the lane axis, weights into (H, ...) column form, b2 scalar.
    # TODO(synk): if the caller can produce x in (2, N) layout / consume a
    # (1, N) output, these two wrapper passes over HBM disappear entirely.
    xt = jnp.pad(x, ((0, n_pad - n), (0, 0))).T          # (2, n_pad)
    w1t = w1.T                                           # (H, 2)
    b1t = b1.reshape(hidden, 1)                          # (H, 1)
    w2c = w2.reshape(hidden, 1)                          # (H, 1)
    b2s = b2.reshape(1, 1)                               # (1, 1)

    kernel = functools.partial(_mlp_kernel, sub=sub, num_sub=num_sub)

    out = pl.pallas_call(
        kernel,
        out_shape=jax.ShapeDtypeStruct((1, n_pad), jnp.float32),
        grid=(n_pad // tb,),
        in_specs=[
            pl.BlockSpec((2, tb), lambda i: (0, i)),           # x (batch tiled)
            pl.BlockSpec((hidden, 2), lambda i: (0, 0)),       # w1 (resident)
            pl.BlockSpec((hidden, 1), lambda i: (0, 0)),       # b1 (resident)
            pl.BlockSpec((hidden, 1), lambda i: (0, 0)),       # w2 (resident)
            pl.BlockSpec(memory_space=pltpu.SMEM),             # b2 scalar
        ],
        out_specs=pl.BlockSpec((1, tb), lambda i: (0, i)),
        compiler_params=pltpu.CompilerParams(
            dimension_semantics=("parallel",)),
    )(xt, w1t, b1t, w2c, b2s)

    # Drop batch padding, restore (N, 1) like the PyTorch module.
    return out[0, :n].reshape(n, 1)


def init_params(key, hidden_units):
    """Deterministic init mimicking nn.Linear's U(-1/sqrt(fan_in), 1/sqrt(fan_in))."""
    k1, k2, k3, k4 = jax.random.split(key, 4)
    bound1 = 1.0 / jnp.sqrt(2.0)
    bound2 = 1.0 / jnp.sqrt(float(hidden_units))
    w1 = jax.random.uniform(k1, (2, hidden_units), jnp.float32, -bound1, bound1)
    b1 = jax.random.uniform(k2, (1, hidden_units), jnp.float32, -bound1, bound1)
    w2 = jax.random.uniform(k3, (hidden_units, 1), jnp.float32, -bound2, bound2)
    b2 = jax.random.uniform(k4, (1, 1), jnp.float32, -bound2, bound2)
    return w1, b1, w2, b2


def _ref_forward(x, w1, b1, w2, b2):
    return 1.0 / (1.0 + jnp.exp(-(jnp.maximum(x @ w1 + b1, 0.0) @ w2 + b2)))


if __name__ == "__main__":
    key = jax.random.PRNGKey(0)
    k_params, k_x = jax.random.split(key)

    hidden_units = 32
    batch = 8
    w1, b1, w2, b2 = init_params(k_params, hidden_units)
    # Logic-gate style binary inputs, shape (batch, 2)
    x = jax.random.bernoulli(k_x, 0.5, (batch, 2)).astype(jnp.float32)

    out = jax.block_until_ready(logic_gate_net(x, w1, b1, w2, b2))
    ref = _ref_forward(x, w1, b1, w2, b2)
    assert out.shape == (batch, 1)
    assert jnp.allclose(out, ref, atol=1e-5), "mismatch vs reference (small)"

    # Larger check exercising the multi-step grid, the unrolled sub-chunk loop
    # and the padded tail.
    xb = jax.random.bernoulli(jax.random.PRNGKey(1), 0.5, (3000, 2)).astype(jnp.float32)
    outb = jax.block_until_ready(
        logic_gate_net(xb, w1, b1, w2, b2, block_batch=2048))
    refb = _ref_forward(xb, w1, b1, w2, b2)
    assert outb.shape == (3000, 1)
    assert jnp.allclose(outb, refb, atol=1e-5), "mismatch vs reference (tiled)"

    print("KERNEL_OK")
</pallas_src>

<mosaic_0001>
module attributes {stable_mosaic.version = 11 : i64} {
  func.func @_mlp_kernel(%arg0: i32, %arg1: memref<2x128xf32, #tpu.memory_space<vmem>>, %arg2: memref<32x2xf32, #tpu.memory_space<vmem>>, %arg3: memref<32x1xf32, #tpu.memory_space<vmem>>, %arg4: memref<32x1xf32, #tpu.memory_space<vmem>>, %arg5: memref<1x1xf32, #tpu.memory_space<smem>>, %arg6: memref<1x128xf32, #tpu.memory_space<vmem>>) attributes {dimension_semantics = [#tpu.dimension_semantics<parallel>], iteration_bounds = array<i64: 1>, scalar_prefetch = 0 : i64, scratch_operands = 0 : i64, tpu.core_type = #tpu.core_type<tc>, window_params = [{transform_indices = @transform_0, window_bounds = array<i64: 2, 128>}, {pipeline_mode = #tpu.pipeline_mode<synchronous>, transform_indices = @transform_1, window_bounds = array<i64: 32, 2>}, {pipeline_mode = #tpu.pipeline_mode<synchronous>, transform_indices = @transform_2, window_bounds = array<i64: 32, 1>}, {pipeline_mode = #tpu.pipeline_mode<synchronous>, transform_indices = @transform_3, window_bounds = array<i64: 32, 1>}, {transform_indices = @transform_4, window_bounds = array<i64: 1, 1>}, {transform_indices = @transform_5, window_bounds = array<i64: 1, 128>}]} {
    %c0 = arith.constant 0 : index
    %c0_0 = arith.constant 0 : index
    %0 = vector.load %arg2[%c0, %c0_0] : memref<32x2xf32, #tpu.memory_space<vmem>>, vector<32x1xf32>
    %c0_1 = arith.constant 0 : index
    %c1 = arith.constant 1 : index
    %1 = vector.load %arg2[%c0_1, %c1] : memref<32x2xf32, #tpu.memory_space<vmem>>, vector<32x1xf32>
    %c0_2 = arith.constant 0 : index
    %c0_3 = arith.constant 0 : index
    %2 = vector.load %arg3[%c0_2, %c0_3] : memref<32x1xf32, #tpu.memory_space<vmem>>, vector<32x1xf32>
    %c0_4 = arith.constant 0 : index
    %c0_5 = arith.constant 0 : index
    %3 = vector.load %arg4[%c0_4, %c0_5] : memref<32x1xf32, #tpu.memory_space<vmem>>, vector<32x1xf32>
    %c0_6 = arith.constant 0 : index
    %c0_7 = arith.constant 0 : index
    %4 = memref.load %arg5[%c0_6, %c0_7] : memref<1x1xf32, #tpu.memory_space<smem>>
    %c0_i32 = arith.constant 0 : i32
    %c128_i32 = arith.constant 128 : i32
    %5 = arith.muli %c0_i32, %c128_i32 : i32
    %6 = tpu.assume_multiple %5, 128 : i32
    %c0_8 = arith.constant 0 : index
    %7 = arith.index_cast %6 : i32 to index
    %8 = vector.load %arg1[%c0_8, %7] : memref<2x128xf32, #tpu.memory_space<vmem>>, vector<1x128xf32>
    %c1_9 = arith.constant 1 : index
    %9 = arith.index_cast %6 : i32 to index
    %10 = vector.load %arg1[%c1_9, %9] : memref<2x128xf32, #tpu.memory_space<vmem>>, vector<1x128xf32>
    %11 = vector.broadcast %0 : vector<32x1xf32> to vector<32x128xf32>
    %12 = vector.broadcast %8 : vector<1x128xf32> to vector<32x128xf32>
    %13 = arith.mulf %11, %12 : vector<32x128xf32>
    %14 = vector.broadcast %1 : vector<32x1xf32> to vector<32x128xf32>
    %15 = vector.broadcast %10 : vector<1x128xf32> to vector<32x128xf32>
    %16 = arith.mulf %14, %15 : vector<32x128xf32>
    %17 = arith.addf %13, %16 : vector<32x128xf32>
    %18 = vector.broadcast %2 : vector<32x1xf32> to vector<32x128xf32>
    %19 = arith.addf %17, %18 : vector<32x128xf32>
    %cst = arith.constant 0.000000e+00 : f32
    %20 = vector.broadcast %cst : f32 to vector<32x128xf32>
    %21 = arith.maximumf %19, %20 : vector<32x128xf32>
    %22 = vector.broadcast %3 : vector<32x1xf32> to vector<32x128xf32>
    %23 = arith.mulf %21, %22 : vector<32x128xf32>
    %cst_10 = arith.constant dense<0.000000e+00> : vector<128xf32>
    %24 = vector.multi_reduction <add>, %23, %cst_10 [0] : vector<32x128xf32> to vector<128xf32>
    %25 = vector.shape_cast %24 : vector<128xf32> to vector<1x128xf32>
    %26 = vector.broadcast %4 : f32 to vector<1x128xf32>
    %27 = arith.addf %25, %26 : vector<1x128xf32>
    %cst_11 = arith.constant 0.000000e+00 : f32
    %28 = vector.broadcast %cst_11 : f32 to vector<1x128xf32>
    %29 = arith.subf %28, %27 : vector<1x128xf32>
    %30 = math.exp %29 : vector<1x128xf32>
    %cst_12 = arith.constant 1.000000e+00 : f32
    %31 = vector.broadcast %cst_12 : f32 to vector<1x128xf32>
    %32 = arith.addf %31, %30 : vector<1x128xf32>
    %cst_13 = arith.constant 1.000000e+00 : f32
    %33 = vector.broadcast %cst_13 : f32 to vector<1x128xf32>
    %34 = arith.divf %33, %32 : vector<1x128xf32>
    %c0_14 = arith.constant 0 : index
    %35 = arith.index_cast %6 : i32 to index
    %36 = vector.load %arg6[%c0_14, %35] : memref<1x128xf32, #tpu.memory_space<vmem>>, vector<1x128xf32>
    tpu.vector_store %arg6[%c0_14, %35], %34 {strides = array<i32>} : memref<1x128xf32, #tpu.memory_space<vmem>>, vector<1x128xf32>,
    %c1_i32 = arith.constant 1 : i32
    return
  }
  func.func @transform_0(%arg0: i32) -> (i32, i32) {
    %c0_i32 = arith.constant 0 : i32
    %c0_i32_0 = arith.constant 0 : i32
    return %c0_i32, %arg0 : i32, i32
  }
  func.func @transform_1(%arg0: i32) -> (i32, i32) {
    %c0_i32 = arith.constant 0 : i32
    %c0_i32_0 = arith.constant 0 : i32
    %c0_i32_1 = arith.constant 0 : i32
    return %c0_i32, %c0_i32_0 : i32, i32
  }
  func.func @transform_2(%arg0: i32) -> (i32, i32) {
    %c0_i32 = arith.constant 0 : i32
    %c0_i32_0 = arith.constant 0 : i32
    %c0_i32_1 = arith.constant 0 : i32
    return %c0_i32, %c0_i32_0 : i32, i32
  }
  func.func @transform_3(%arg0: i32) -> (i32, i32) {
    %c0_i32 = arith.constant 0 : i32
    %c0_i32_0 = arith.constant 0 : i32
    %c0_i32_1 = arith.constant 0 : i32
    return %c0_i32, %c0_i32_0 : i32, i32
  }
  func.func @transform_4(%arg0: i32) -> (i32, i32) {
    %c0_i32 = arith.constant 0 : i32
    %c0_i32_0 = arith.constant 0 : i32
    %c0_i32_1 = arith.constant 0 : i32
    return %c0_i32, %c0_i32_0 : i32, i32
  }
  func.func @transform_5(%arg0: i32) -> (i32, i32) {
    %c0_i32 = arith.constant 0 : i32
    %c0_i32_0 = arith.constant 0 : i32
    return %c0_i32, %arg0 : i32, i32
  }
}

</mosaic_0001>

<llo_original>
// kernel: tpu_custom_call.1
$region0: #{tpu_custom_call.1}
  #allocation0 [shape = 'u32[]', space=smem, size = 0x4, offset = 0x4, fixed_abs, tag = 'smem constant byte address 0x4 - core index']
  #allocation1 [shape = 'u32[72,128]{1,0:T(1,128)}', space=vmem, size = 0x9000, scoped, tag = 'internal scratch']
  #allocation2 [shape = 'f32[1,1]{1,0:T(1,128)S(6)}', space=smem, size = 0x200, scoped, tag = 'scoped memory for tpu_custom_call.1']
  %s0 = inlined_call_operand.vmem [shape: f32[2,128], index: 0, kind: input, shape index: {}]
  %s1 = inlined_call_operand.vmem [shape: f32[32,2], index: 1, kind: input, shape index: {}]
  %s2 = inlined_call_operand.vmem [shape: f32[32,1], index: 2, kind: input, shape index: {}]
  %s3 = inlined_call_operand.vmem [shape: f32[32,1], index: 3, kind: input, shape index: {}]
  %s4 = inlined_call_operand.<no memory space> [shape: f32[1,1], index: 4, kind: input, shape index: {}]
  %s5 = inlined_call_operand.hbm [shape: f32[1,128], index: 5, kind: output, shape index: {}]
  %s6 = sld [smem:[#allocation0]]
  $region30: #{tpu_custom_call.1} parent=0
    _
  %s8 = ssub.s32 1, %s6
  %s9 = scalar_select 0, %s8, %s6
  %10 = sst [smem:[#allocation2]] %s4
  $region1: #{tpu_custom_call.1} parent=0
    #allocation3 [shape = 'u8[512]{0}', space=vmem, size = 0x400, scoped, tag = 'output window, operand 0, single buffered']
    #allocation4 [shape = 's32[1]{0}', space=sflag, size = 0x4, scoped, tag = 'scoped memory for tpu_custom_call.1']
    %11 = vsyncpa [#allocation4], 0
    // Predicated region
    $region2: #{tpu_custom_call.1} parent=1 // pred_check
      _
    $region3: #{tpu_custom_call.1} parent=1 // pred_check_branch
      %13 = sbr.rel (0) target = $region5
    $region4: #{tpu_custom_call.1} parent=1 // pred_region
      _
    $region5: #{tpu_custom_call.1} parent=1 // pred_fallthru
      _
    // Predicated region
    $region6: #{tpu_custom_call.1} parent=1 // pred_check
      _
    $region7: #{tpu_custom_call.1} parent=1 // pred_check_branch
      %15 = sbr.rel (0) target = $region9
    $region8: #{tpu_custom_call.1} parent=1 // pred_region
      _
    $region9: #{tpu_custom_call.1} parent=1 // pred_fallthru
      _
    // Predicated region
    $region10: #{tpu_custom_call.1} parent=1 // pred_check
      _
    $region11: #{tpu_custom_call.1} parent=1 // pred_check_branch
      %17 = sbr.rel (0) target = $region13
    $region12: #{tpu_custom_call.1} parent=1 // pred_region
      _
    $region13: #{tpu_custom_call.1} parent=1 // pred_fallthru
      _
    // Predicated region
    $region14: #{tpu_custom_call.1} parent=1 // pred_check
      _
    $region15: #{tpu_custom_call.1} parent=1 // pred_check_branch
      %19 = sbr.rel (0) target = $region17
    $region16: #{tpu_custom_call.1} parent=1 // pred_region
      _
    $region17: #{tpu_custom_call.1} parent=1 // pred_fallthru
      _
    // Predicated region
    $region18: #{tpu_custom_call.1} parent=1 // pred_check
      _
    $region19: #{tpu_custom_call.1} parent=1 // pred_check_branch
      %21 = sbr.rel (0) target = $region21
    $region20: #{tpu_custom_call.1} parent=1 // pred_region
      _
    $region21: #{tpu_custom_call.1} parent=1 // pred_fallthru
      _
    %v22 = vld [vmem:[%s1] sm:$0xff]
    %v23 = vld [vmem:[%s1 + $0x8] sm:$0xff]
    %v24 = vld [vmem:[%s1 + $0x10] sm:$0xff]
    %v25 = vld [vmem:[%s1 + $0x18] sm:$0xff]
    %v26 = vld [vmem:[%s2] sm:$0xff]
    %v27 = vld [vmem:[%s2 + $0x8] sm:$0xff]
    %v28 = vld [vmem:[%s2 + $0x10] sm:$0xff]
    %v29 = vld [vmem:[%s2 + $0x18] sm:$0xff]
    %v30 = vld [vmem:[%s3] sm:$0xff]
    %v31 = vld [vmem:[%s3 + $0x8] sm:$0xff]
    %v32 = vld [vmem:[%s3 + $0x10] sm:$0xff]
    %v33 = vld [vmem:[%s3 + $0x18] sm:$0xff]
    %s34 = sld [smem:[#allocation2]]
    %v35 = vld [vmem:[%s0] sm:$0x1]
    %v36 = vld [vmem:[%s0 + $0x1] sm:$0x1]
    %38 = vset.pattern.permute.xlu0 0
    %39 = vperm.xlu0 %38, %v22
    %v40 = vpop.permute.xlu0 %39
    %43 = vset.pattern.permute.xlu0 0
    %44 = vperm.xlu0 %43, %v23
    %v45 = vpop.permute.xlu0 %44
    %48 = vset.pattern.permute.xlu0 0
    %49 = vperm.xlu0 %48, %v24
    %v50 = vpop.permute.xlu0 %49
    %53 = vset.pattern.permute.xlu0 0
    %54 = vperm.xlu0 %53, %v25
    %v55 = vpop.permute.xlu0 %54
    %v57 = vperm.slane %v35, 0
    %v58 = vmul.f32 %v40, %v57
    %v59 = vmul.f32 %v45, %v57
    %v60 = vmul.f32 %v50, %v57
    %v61 = vmul.f32 %v55, %v57
    %62 = vset.pattern.permute.xlu0 1
    %63 = vperm.xlu0 %62, %v22
    %v64 = vpop.permute.xlu0 %63
    %66 = vset.pattern.permute.xlu0 1
    %67 = vperm.xlu0 %66, %v23
    %v68 = vpop.permute.xlu0 %67
    %70 = vset.pattern.permute.xlu0 1
    %71 = vperm.xlu0 %70, %v24
    %v72 = vpop.permute.xlu0 %71
    %74 = vset.pattern.permute.xlu0 1
    %75 = vperm.xlu0 %74, %v25
    %v76 = vpop.permute.xlu0 %75
    %v78 = vperm.slane %v36, 0
    %v79 = vmul.f32 %v64, %v78
    %v80 = vmul.f32 %v68, %v78
    %v81 = vmul.f32 %v72, %v78
    %v82 = vmul.f32 %v76, %v78
    %v83 = vadd.f32 %v58, %v79
    %v84 = vadd.f32 %v59, %v80
    %v85 = vadd.f32 %v60, %v81
    %v86 = vadd.f32 %v61, %v82
    %88 = vset.pattern.permute.xlu0 0
    %89 = vperm.xlu0 %88, %v26
    %v90 = vpop.permute.xlu0 %89
    %93 = vset.pattern.permute.xlu0 0
    %94 = vperm.xlu0 %93, %v27
    %v95 = vpop.permute.xlu0 %94
    %98 = vset.pattern.permute.xlu0 0
    %99 = vperm.xlu0 %98, %v28
    %v100 = vpop.permute.xlu0 %99
    %103 = vset.pattern.permute.xlu0 0
    %104 = vperm.xlu0 %103, %v29
    %v105 = vpop.permute.xlu0 %104
    %v107 = vadd.f32 %v83, %v90
    %v108 = vadd.f32 %v84, %v95
    %v109 = vadd.f32 %v85, %v100
    %v110 = vadd.f32 %v86, %v105
    %v111 = vmax.f32 %v107, 0.0
    %v112 = vmax.f32 %v108, 0.0
    %v113 = vmax.f32 %v109, 0.0
    %v114 = vmax.f32 %v110, 0.0
    %116 = vset.pattern.permute.xlu0 0
    %117 = vperm.xlu0 %116, %v30
    %v118 = vpop.permute.xlu0 %117
    %121 = vset.pattern.permute.xlu0 0
    %122 = vperm.xlu0 %121, %v31
    %v123 = vpop.permute.xlu0 %122
    %126 = vset.pattern.permute.xlu0 0
    %127 = vperm.xlu0 %126, %v32
    %v128 = vpop.permute.xlu0 %127
    %131 = vset.pattern.permute.xlu0 0
    %132 = vperm.xlu0 %131, %v33
    %v133 = vpop.permute.xlu0 %132
    %v135 = vmul.f32 %v111, %v118
    %v136 = vmul.f32 %v112, %v123
    %v137 = vmul.f32 %v113, %v128
    %v138 = vmul.f32 %v114, %v133
    %v139 = vadd.f32 %v135, %v136
    %v140 = vadd.f32 %v139, %v137
    %v141 = vadd.f32 %v140, %v138
    %v142 = vrot.slane %v141, 4
    %v143 = vadd.f32 %v141, %v142
    %v144 = vrot.slane %v143, 2
    %v145 = vadd.f32 %v143, %v144
    %v146 = vrot.slane %v145, 1
    %v147 = vadd.f32 %v145, %v146
    %v148 = vstv %s34
    %v149 = vadd.f32 %v147, %v148
    %v150 = vsub.f32 0.0, %v149
    %v151 = vmul.f32 %v150, 1.442695
    %v152 = vpow.pop %v151
    %v153 = vadd.f32 %v152, 1.0
    %v154 = vrcp.pop %v153
    %v155 = vmul.f32 %v153, %v154
    %v156 = vsub.f32 1.0, %v155
    %v157 = vmul.f32 %v154, %v156
    %v158 = vadd.f32 %v154, %v157
    %vm159 = vweird.f32 %v153
    %vm160 = vweird.f32 %v154
    %vm161 = vmor %vm159, %vm160
    %v162 = vsel %vm161, %v154, %v158
    %v163 = vand.u32 2147483647, %v153
    %vm164 = vcmp.eq.f32.partialorder %v163, 8.507059e+37
    %v165 = vand.u32 %v153, 2147483648
    %v166 = vor.u32 1.1754944e-38, %v165
    %v167 = vsel %vm164, %v166, %v162
    %v168 = vmul.f32 1.0, %v167
    %169 = vst [vmem:[#allocation3] sm:$0x1] %v168
    // Predicated region
    $region22: #{tpu_custom_call.1} parent=1 // pred_check
      _
    $region23: #{tpu_custom_call.1} parent=1 // pred_check_branch
      %171 = sbr.rel (0) target = $region25
    $region24: #{tpu_custom_call.1} parent=1 // pred_region
      %173 = vsyncadd [#allocation4], 0
      %s175 = sshll.u32 [#allocation3], 4
      %s176 = int_to_ptr.vmem [resolvable:$true] %s175
      %s177 = sshll.u32 %s5, 4
      %s178 = int_to_ptr.hbm [resolvable:$true] %s177
      %180 = dma.vmem_to_hbm [thread:$0]  %s176, 16, %s178, [#allocation4]
    $region25: #{tpu_custom_call.1} parent=1 // pred_fallthru
      _
    // Predicated region
    $region26: #{tpu_custom_call.1} parent=1 // pred_check
      _
    $region27: #{tpu_custom_call.1} parent=1 // pred_check_branch
      %182 = sbr.rel (0) target = $region29
    $region28: #{tpu_custom_call.1} parent=1 // pred_region
      %184 = dma.done [#allocation4], 16
    $region29: #{tpu_custom_call.1} parent=1 // pred_fallthru
      _
    %185 = vsyncpa [#allocation4], 1

</llo_original>
